<compile_context>
chip_gen: v6e
topology: v6e:2x2x1
jax: 0.10.0
libtpu: 0.0.40
codegen_flags: <defaults>
</compile_context>

<pallas_src>
import functools

import jax
import jax.numpy as jnp
from jax.experimental import pallas as pl
from jax.experimental.pallas import tpu as pltpu


def _round_up(x, m):
    return ((x + m - 1) // m) * m


def _cdiv(a, b):
    return (a + b - 1) // b


def _downscale_kernel(xf_ref, w_ref, shift_ref, out_ref, *, TQ, WIN, Wp2, K):
    # xf_ref:    (1, 4, P_pad, C) bf16 — 2x2 phase-split, spatially padded input
    #                                    for this image; pixels flattened row-major
    #                                    on the sublane axis, channels on lanes.
    # w_ref:     (K*K, O, C)      bf16 — per-tap conv weights with BN scale folded.
    # shift_ref: (O, 1)           f32  — beta + (conv_bias - running_mean) * scale.
    # out_ref:   (1, O, TQ)       bf16 — channel-major output tile; the TQ
    #                                    flattened output pixels sit on lanes.
    qi = pl.program_id(1)
    q0 = pl.multiple_of(qi * TQ, 128)

    # One aligned dynamic-window load per phase; the K*K taps are then cheap
    # static shifted slices of those in-register windows.
    win = [xf_ref[0, ph, pl.ds(q0, WIN), :] for ph in range(4)]

    acc = None
    for ky in range(K):
        for kx in range(K):
            ph = 2 * (ky % 2) + (kx % 2)
            off = (ky // 2) * Wp2 + (kx // 2)
            xs = win[ph][off:off + TQ]               # (TQ, C) bf16
            wt = w_ref[ky * K + kx]                  # (O, C)  bf16
            part = jax.lax.dot_general(              # (O, TQ) = wt @ xs.T on MXU
                wt, xs, (((1,), (1,)), ((), ())),
                preferred_element_type=jnp.float32)
            acc = part if acc is None else acc + part

    y = acc + shift_ref[...]                         # folded conv-bias + BN shift
    y = jnp.where(y >= 0.0, y, 0.1 * y)              # LeakyReLU(0.1)
    out_ref[0] = y.astype(out_ref.dtype)


@functools.partial(
    jax.jit,
    static_argnames=("kernel_size", "stride", "padding", "eps", "tq_cap"))
def downscale_forward(x, conv_w, conv_b, bn_gamma, bn_beta, bn_mean, bn_var,
                      kernel_size=3, stride=2, padding=1, eps=1e-5,
                      tq_cap=2048):
    assert stride == 2 and kernel_size == 3, "kernel specialized for k=3, s=2"
    N, C, H, W = x.shape
    O = conv_w.shape[0]
    K = kernel_size
    p = padding

    Ho = (H + 2 * p - K) // stride + 1
    Wo = (W + 2 * p - K) // stride + 1
    Wp2 = Wo + 1                  # phase-plane width (covers the +1 tap reach)
    Q = Ho * Wp2                  # flattened output domain incl. one junk column

    # Pixel-tile size: multiple of 128 (lane-dense unmasked stores), capped so
    # per-step working sets stay small relative to the VMEM budget.
    nq = max(1, _cdiv(Q, tq_cap))
    TQ = _round_up(_cdiv(Q, nq), 128)
    nq = _cdiv(Q, TQ)
    Q_pad = nq * TQ
    WIN = _round_up(TQ + (K // 2) * (Wp2 + 1) + 2, 8)
    P_need = (nq - 1) * TQ + WIN
    Hp2 = _cdiv(P_need, Wp2)      # phase-plane height (>= Ho + 1)
    P_pad = Hp2 * Wp2

    # Pad + 2x2 phase-split + channels-last + flatten pixels.  All x-sized XLA
    # glue (fused by XLA); no im2col array is ever written to HBM.
    xb = x.astype(jnp.bfloat16)
    xp = jnp.pad(xb, ((0, 0), (0, 0),
                      (p, 2 * Hp2 - H - p), (p, 2 * Wp2 - W - p)))
    phases = [xp[:, :, py::2, px::2] for py in (0, 1) for px in (0, 1)]
    xf = jnp.stack(phases, axis=1)                        # (N, 4, C, Hp2, Wp2)
    xf = xf.transpose(0, 1, 3, 4, 2).reshape(N, 4, P_pad, C)

    # Fold BatchNorm (inference) into per-tap weights + a per-channel shift.
    scale = bn_gamma / jnp.sqrt(bn_var + eps)                        # (O,)
    w_s = conv_w * scale[:, None, None, None]                        # (O, C, K, K)
    w_taps = w_s.transpose(2, 3, 0, 1).reshape(K * K, O, C).astype(jnp.bfloat16)
    shift = (bn_beta + (conv_b - bn_mean) * scale).reshape(O, 1).astype(jnp.float32)

    kern = functools.partial(_downscale_kernel, TQ=TQ, WIN=WIN, Wp2=Wp2, K=K)
    out_flat = pl.pallas_call(
        kern,
        out_shape=jax.ShapeDtypeStruct((N, O, Q_pad), jnp.bfloat16),
        grid=(N, nq),
        in_specs=[
            # Whole phase-split image stays VMEM-resident across the inner
            # pixel-tile axis (fetched once per image).
            pl.BlockSpec((1, 4, P_pad, C), lambda n, qi: (n, 0, 0, 0)),
            pl.BlockSpec((K * K, O, C), lambda n, qi: (0, 0, 0)),
            pl.BlockSpec((O, 1), lambda n, qi: (0, 0)),
        ],
        out_specs=pl.BlockSpec((1, O, TQ), lambda n, qi: (n, 0, qi)),
        compiler_params=pltpu.CompilerParams(
            dimension_semantics=("parallel", "parallel"),
            vmem_limit_bytes=32 * 1024 * 1024,
        ),
    )(xf, w_taps, shift)

    # NCHW restore: free reshape + thin slice dropping the junk column.
    out = out_flat[:, :, :Q].reshape(N, O, Ho, Wp2)[:, :, :, :Wo]
    return out.astype(jnp.float32)


def _reference(x, conv_w, conv_b, bn_gamma, bn_beta, bn_mean, bn_var,
               stride=2, padding=1, eps=1e-5):
    # Pure-JAX f32 reference (inference BN, eval-mode Dropout2d = identity).
    y = jax.lax.conv_general_dilated(
        x.astype(jnp.float32), conv_w.astype(jnp.float32),
        window_strides=(stride, stride),
        padding=((padding, padding), (padding, padding)),
        dimension_numbers=("NCHW", "OIHW", "NCHW"))
    y = y + conv_b.reshape(1, -1, 1, 1)
    y = (y - bn_mean.reshape(1, -1, 1, 1)) / jnp.sqrt(
        bn_var.reshape(1, -1, 1, 1) + eps)
    y = y * bn_gamma.reshape(1, -1, 1, 1) + bn_beta.reshape(1, -1, 1, 1)
    return jnp.where(y >= 0, y, 0.1 * y)


if __name__ == "__main__":
    key = jax.random.PRNGKey(0)
    N, in_ch, H, W = 2, 4, 16, 16
    out_ch, K = 8, 3

    k_x, k_w, k_b, k_g, k_be, k_m, k_v = jax.random.split(key, 7)
    x = jax.random.normal(k_x, (N, in_ch, H, W), dtype=jnp.float32)

    # Deterministic synthetic parameters (not a checkpoint).
    conv_w = 0.1 * jax.random.normal(k_w, (out_ch, in_ch, K, K), dtype=jnp.float32)
    conv_b = 0.05 * jax.random.normal(k_b, (out_ch,), dtype=jnp.float32)
    bn_gamma = 1.0 + 0.1 * jax.random.normal(k_g, (out_ch,), dtype=jnp.float32)
    bn_beta = 0.1 * jax.random.normal(k_be, (out_ch,), dtype=jnp.float32)
    bn_mean = 0.1 * jax.random.normal(k_m, (out_ch,), dtype=jnp.float32)
    bn_var = jnp.abs(1.0 + 0.1 * jax.random.normal(k_v, (out_ch,), dtype=jnp.float32))

    out = downscale_forward(x, conv_w, conv_b, bn_gamma, bn_beta, bn_mean, bn_var)
    jax.block_until_ready(out)

    ref = _reference(x, conv_w, conv_b, bn_gamma, bn_beta, bn_mean, bn_var)
    assert out.shape == (N, out_ch, H // 2, W // 2), out.shape
    # bf16 activations/weights/output -> looser tolerance than a pure-f32 path.
    assert jnp.allclose(out, ref, atol=5e-2, rtol=5e-2), float(
        jnp.max(jnp.abs(out - ref)))

    print("KERNEL_OK")
</pallas_src>

<mosaic_0001>
module attributes {stable_mosaic.version = 11 : i64} {
  func.func @_downscale_kernel(%arg0: i32, %arg1: i32, %arg2: memref<1x4x144x4xbf16, #tpu.memory_space<vmem>>, %arg3: memref<9x8x4xbf16, #tpu.memory_space<vmem>>, %arg4: memref<8x1xf32, #tpu.memory_space<vmem>>, %arg5: memref<1x8x128xbf16, #tpu.memory_space<vmem>>) attributes {dimension_semantics = [#tpu.dimension_semantics<parallel>, #tpu.dimension_semantics<parallel>], iteration_bounds = array<i64: 2, 1>, scalar_prefetch = 0 : i64, scratch_operands = 0 : i64, tpu.core_type = #tpu.core_type<tc>, window_params = [{transform_indices = @transform_0, window_bounds = array<i64: 1, 4, 144, 4>}, {pipeline_mode = #tpu.pipeline_mode<synchronous>, transform_indices = @transform_1, window_bounds = array<i64: 9, 8, 4>}, {pipeline_mode = #tpu.pipeline_mode<synchronous>, transform_indices = @transform_2, window_bounds = array<i64: 8, 1>}, {transform_indices = @transform_3, window_bounds = array<i64: 1, 8, 128>}]} {
    %c128_i32 = arith.constant 128 : i32
    %0 = arith.muli %arg1, %c128_i32 : i32
    %1 = tpu.assume_multiple %0, 128 : i32
    %c0 = arith.constant 0 : index
    %c0_0 = arith.constant 0 : index
    %2 = arith.index_cast %1 : i32 to index
    %c0_1 = arith.constant 0 : index
    %3 = vector.load %arg2[%c0, %c0_0, %2, %c0_1] : memref<1x4x144x4xbf16, #tpu.memory_space<vmem>>, vector<1x1x144x4xbf16>
    %4 = vector.shape_cast %3 : vector<1x1x144x4xbf16> to vector<144x4xbf16>
    %c0_2 = arith.constant 0 : index
    %c1 = arith.constant 1 : index
    %5 = arith.index_cast %1 : i32 to index
    %c0_3 = arith.constant 0 : index
    %6 = vector.load %arg2[%c0_2, %c1, %5, %c0_3] : memref<1x4x144x4xbf16, #tpu.memory_space<vmem>>, vector<1x1x144x4xbf16>
    %7 = vector.shape_cast %6 : vector<1x1x144x4xbf16> to vector<144x4xbf16>
    %c0_4 = arith.constant 0 : index
    %c2 = arith.constant 2 : index
    %8 = arith.index_cast %1 : i32 to index
    %c0_5 = arith.constant 0 : index
    %9 = vector.load %arg2[%c0_4, %c2, %8, %c0_5] : memref<1x4x144x4xbf16, #tpu.memory_space<vmem>>, vector<1x1x144x4xbf16>
    %10 = vector.shape_cast %9 : vector<1x1x144x4xbf16> to vector<144x4xbf16>
    %c0_6 = arith.constant 0 : index
    %c3 = arith.constant 3 : index
    %11 = arith.index_cast %1 : i32 to index
    %c0_7 = arith.constant 0 : index
    %12 = vector.load %arg2[%c0_6, %c3, %11, %c0_7] : memref<1x4x144x4xbf16, #tpu.memory_space<vmem>>, vector<1x1x144x4xbf16>
    %13 = vector.shape_cast %12 : vector<1x1x144x4xbf16> to vector<144x4xbf16>
    %14 = vector.extract_strided_slice %4 {offsets = [0, 0], sizes = [128, 4], strides = [1, 1]} : vector<144x4xbf16> to vector<128x4xbf16>
    %c0_8 = arith.constant 0 : index
    %c0_9 = arith.constant 0 : index
    %c0_10 = arith.constant 0 : index
    %15 = vector.load %arg3[%c0_8, %c0_9, %c0_10] : memref<9x8x4xbf16, #tpu.memory_space<vmem>>, vector<1x8x4xbf16>
    %16 = vector.shape_cast %15 : vector<1x8x4xbf16> to vector<8x4xbf16>
    %cst = arith.constant dense<0.000000e+00> : vector<8x128xf32>
    %17 = tpu.matmul %16, %14, %cst {dimension_numbers = #tpu.dot_dimension_numbers<[1], [1], [0], [0], [0, 0, 1, 0], [], []>} : vector<8x4xbf16>, vector<128x4xbf16>, vector<8x128xf32> -> vector<8x128xf32>
    %18 = vector.extract_strided_slice %7 {offsets = [0, 0], sizes = [128, 4], strides = [1, 1]} : vector<144x4xbf16> to vector<128x4xbf16>
    %c1_11 = arith.constant 1 : index
    %c0_12 = arith.constant 0 : index
    %c0_13 = arith.constant 0 : index
    %19 = vector.load %arg3[%c1_11, %c0_12, %c0_13] : memref<9x8x4xbf16, #tpu.memory_space<vmem>>, vector<1x8x4xbf16>
    %20 = vector.shape_cast %19 : vector<1x8x4xbf16> to vector<8x4xbf16>
    %cst_14 = arith.constant dense<0.000000e+00> : vector<8x128xf32>
    %21 = tpu.matmul %20, %18, %cst_14 {dimension_numbers = #tpu.dot_dimension_numbers<[1], [1], [0], [0], [0, 0, 1, 0], [], []>} : vector<8x4xbf16>, vector<128x4xbf16>, vector<8x128xf32> -> vector<8x128xf32>
    %22 = arith.addf %17, %21 : vector<8x128xf32>
    %23 = vector.extract_strided_slice %4 {offsets = [1, 0], sizes = [128, 4], strides = [1, 1]} : vector<144x4xbf16> to vector<128x4xbf16>
    %c2_15 = arith.constant 2 : index
    %c0_16 = arith.constant 0 : index
    %c0_17 = arith.constant 0 : index
    %24 = vector.load %arg3[%c2_15, %c0_16, %c0_17] : memref<9x8x4xbf16, #tpu.memory_space<vmem>>, vector<1x8x4xbf16>
    %25 = vector.shape_cast %24 : vector<1x8x4xbf16> to vector<8x4xbf16>
    %cst_18 = arith.constant dense<0.000000e+00> : vector<8x128xf32>
    %26 = tpu.matmul %25, %23, %cst_18 {dimension_numbers = #tpu.dot_dimension_numbers<[1], [1], [0], [0], [0, 0, 1, 0], [], []>} : vector<8x4xbf16>, vector<128x4xbf16>, vector<8x128xf32> -> vector<8x128xf32>
    %27 = arith.addf %22, %26 : vector<8x128xf32>
    %28 = vector.extract_strided_slice %10 {offsets = [0, 0], sizes = [128, 4], strides = [1, 1]} : vector<144x4xbf16> to vector<128x4xbf16>
    %c3_19 = arith.constant 3 : index
    %c0_20 = arith.constant 0 : index
    %c0_21 = arith.constant 0 : index
    %29 = vector.load %arg3[%c3_19, %c0_20, %c0_21] : memref<9x8x4xbf16, #tpu.memory_space<vmem>>, vector<1x8x4xbf16>
    %30 = vector.shape_cast %29 : vector<1x8x4xbf16> to vector<8x4xbf16>
    %cst_22 = arith.constant dense<0.000000e+00> : vector<8x128xf32>
    %31 = tpu.matmul %30, %28, %cst_22 {dimension_numbers = #tpu.dot_dimension_numbers<[1], [1], [0], [0], [0, 0, 1, 0], [], []>} : vector<8x4xbf16>, vector<128x4xbf16>, vector<8x128xf32> -> vector<8x128xf32>
    %32 = arith.addf %27, %31 : vector<8x128xf32>
    %33 = vector.extract_strided_slice %13 {offsets = [0, 0], sizes = [128, 4], strides = [1, 1]} : vector<144x4xbf16> to vector<128x4xbf16>
    %c4 = arith.constant 4 : index
    %c0_23 = arith.constant 0 : index
    %c0_24 = arith.constant 0 : index
    %34 = vector.load %arg3[%c4, %c0_23, %c0_24] : memref<9x8x4xbf16, #tpu.memory_space<vmem>>, vector<1x8x4xbf16>
    %35 = vector.shape_cast %34 : vector<1x8x4xbf16> to vector<8x4xbf16>
    %cst_25 = arith.constant dense<0.000000e+00> : vector<8x128xf32>
    %36 = tpu.matmul %35, %33, %cst_25 {dimension_numbers = #tpu.dot_dimension_numbers<[1], [1], [0], [0], [0, 0, 1, 0], [], []>} : vector<8x4xbf16>, vector<128x4xbf16>, vector<8x128xf32> -> vector<8x128xf32>
    %37 = arith.addf %32, %36 : vector<8x128xf32>
    %38 = vector.extract_strided_slice %10 {offsets = [1, 0], sizes = [128, 4], strides = [1, 1]} : vector<144x4xbf16> to vector<128x4xbf16>
    %c5 = arith.constant 5 : index
    %c0_26 = arith.constant 0 : index
    %c0_27 = arith.constant 0 : index
    %39 = vector.load %arg3[%c5, %c0_26, %c0_27] : memref<9x8x4xbf16, #tpu.memory_space<vmem>>, vector<1x8x4xbf16>
    %40 = vector.shape_cast %39 : vector<1x8x4xbf16> to vector<8x4xbf16>
    %cst_28 = arith.constant dense<0.000000e+00> : vector<8x128xf32>
    %41 = tpu.matmul %40, %38, %cst_28 {dimension_numbers = #tpu.dot_dimension_numbers<[1], [1], [0], [0], [0, 0, 1, 0], [], []>} : vector<8x4xbf16>, vector<128x4xbf16>, vector<8x128xf32> -> vector<8x128xf32>
    %42 = arith.addf %37, %41 : vector<8x128xf32>
    %43 = vector.extract_strided_slice %4 {offsets = [9, 0], sizes = [128, 4], strides = [1, 1]} : vector<144x4xbf16> to vector<128x4xbf16>
    %c6 = arith.constant 6 : index
    %c0_29 = arith.constant 0 : index
    %c0_30 = arith.constant 0 : index
    %44 = vector.load %arg3[%c6, %c0_29, %c0_30] : memref<9x8x4xbf16, #tpu.memory_space<vmem>>, vector<1x8x4xbf16>
    %45 = vector.shape_cast %44 : vector<1x8x4xbf16> to vector<8x4xbf16>
    %cst_31 = arith.constant dense<0.000000e+00> : vector<8x128xf32>
    %46 = tpu.matmul %45, %43, %cst_31 {dimension_numbers = #tpu.dot_dimension_numbers<[1], [1], [0], [0], [0, 0, 1, 0], [], []>} : vector<8x4xbf16>, vector<128x4xbf16>, vector<8x128xf32> -> vector<8x128xf32>
    %47 = arith.addf %42, %46 : vector<8x128xf32>
    %48 = vector.extract_strided_slice %7 {offsets = [9, 0], sizes = [128, 4], strides = [1, 1]} : vector<144x4xbf16> to vector<128x4xbf16>
    %c7 = arith.constant 7 : index
    %c0_32 = arith.constant 0 : index
    %c0_33 = arith.constant 0 : index
    %49 = vector.load %arg3[%c7, %c0_32, %c0_33] : memref<9x8x4xbf16, #tpu.memory_space<vmem>>, vector<1x8x4xbf16>
    %50 = vector.shape_cast %49 : vector<1x8x4xbf16> to vector<8x4xbf16>
    %cst_34 = arith.constant dense<0.000000e+00> : vector<8x128xf32>
    %51 = tpu.matmul %50, %48, %cst_34 {dimension_numbers = #tpu.dot_dimension_numbers<[1], [1], [0], [0], [0, 0, 1, 0], [], []>} : vector<8x4xbf16>, vector<128x4xbf16>, vector<8x128xf32> -> vector<8x128xf32>
    %52 = arith.addf %47, %51 : vector<8x128xf32>
    %53 = vector.extract_strided_slice %4 {offsets = [10, 0], sizes = [128, 4], strides = [1, 1]} : vector<144x4xbf16> to vector<128x4xbf16>
    %c8 = arith.constant 8 : index
    %c0_35 = arith.constant 0 : index
    %c0_36 = arith.constant 0 : index
    %54 = vector.load %arg3[%c8, %c0_35, %c0_36] : memref<9x8x4xbf16, #tpu.memory_space<vmem>>, vector<1x8x4xbf16>
    %55 = vector.shape_cast %54 : vector<1x8x4xbf16> to vector<8x4xbf16>
    %cst_37 = arith.constant dense<0.000000e+00> : vector<8x128xf32>
    %56 = tpu.matmul %55, %53, %cst_37 {dimension_numbers = #tpu.dot_dimension_numbers<[1], [1], [0], [0], [0, 0, 1, 0], [], []>} : vector<8x4xbf16>, vector<128x4xbf16>, vector<8x128xf32> -> vector<8x128xf32>
    %57 = arith.addf %52, %56 : vector<8x128xf32>
    %c0_38 = arith.constant 0 : index
    %c0_39 = arith.constant 0 : index
    %58 = vector.load %arg4[%c0_38, %c0_39] : memref<8x1xf32, #tpu.memory_space<vmem>>, vector<8x1xf32>
    %59 = vector.broadcast %58 : vector<8x1xf32> to vector<8x128xf32>
    %60 = arith.addf %57, %59 : vector<8x128xf32>
    %cst_40 = arith.constant 0.000000e+00 : f32
    %61 = vector.broadcast %cst_40 : f32 to vector<8x128xf32>
    %62 = arith.cmpf oge, %60, %61 : vector<8x128xf32>
    %cst_41 = arith.constant 1.000000e-01 : f32
    %63 = vector.broadcast %cst_41 : f32 to vector<8x128xf32>
    %64 = arith.mulf %63, %60 : vector<8x128xf32>
    %65 = arith.select %62, %60, %64 : vector<8x128xi1>, vector<8x128xf32>
    %66 = arith.truncf %65 : vector<8x128xf32> to vector<8x128xbf16>
    %c0_42 = arith.constant 0 : index
    %c0_43 = arith.constant 0 : index
    %c0_44 = arith.constant 0 : index
    %67 = vector.load %arg5[%c0_42, %c0_43, %c0_44] : memref<1x8x128xbf16, #tpu.memory_space<vmem>>, vector<1x8x128xbf16>
    %68 = vector.shape_cast %67 : vector<1x8x128xbf16> to vector<8x128xbf16>
    %69 = vector.shape_cast %66 : vector<8x128xbf16> to vector<1x8x128xbf16>
    tpu.vector_store %arg5[%c0_42, %c0_43, %c0_44], %69 {strides = array<i32>} : memref<1x8x128xbf16, #tpu.memory_space<vmem>>, vector<1x8x128xbf16>,
    return
  }
  func.func @transform_0(%arg0: i32, %arg1: i32) -> (i32, i32, i32, i32) {
    %c0_i32 = arith.constant 0 : i32
    %c0_i32_0 = arith.constant 0 : i32
    %c0_i32_1 = arith.constant 0 : i32
    %c0_i32_2 = arith.constant 0 : i32
    return %arg0, %c0_i32, %c0_i32_0, %c0_i32_1 : i32, i32, i32, i32
  }
  func.func @transform_1(%arg0: i32, %arg1: i32) -> (i32, i32, i32) {
    %c0_i32 = arith.constant 0 : i32
    %c0_i32_0 = arith.constant 0 : i32
    %c0_i32_1 = arith.constant 0 : i32
    %c0_i32_2 = arith.constant 0 : i32
    return %c0_i32, %c0_i32_0, %c0_i32_1 : i32, i32, i32
  }
  func.func @transform_2(%arg0: i32, %arg1: i32) -> (i32, i32) {
    %c0_i32 = arith.constant 0 : i32
    %c0_i32_0 = arith.constant 0 : i32
    %c0_i32_1 = arith.constant 0 : i32
    return %c0_i32, %c0_i32_0 : i32, i32
  }
  func.func @transform_3(%arg0: i32, %arg1: i32) -> (i32, i32, i32) {
    %c0_i32 = arith.constant 0 : i32
    %c0_i32_0 = arith.constant 0 : i32
    return %arg0, %c0_i32, %arg1 : i32, i32, i32
  }
}

</mosaic_0001>

<llo_original>
// kernel: downscale_forward.1
$region0: #{downscale_forward.1}
  #allocation0 [shape = 'u32[]', space=smem, size = 0x4, offset = 0x4, fixed_abs, tag = 'smem constant byte address 0x4 - core index']
  #allocation1 [shape = 'u32[144,128]{1,0:T(1,128)}', space=vmem, size = 0x12000, scoped, tag = 'internal scratch']
  %s0 = inlined_call_operand.vmem [shape: bf16[2,4,144,4], index: 0, kind: input, shape index: {}]
  %s1 = inlined_call_operand.vmem [shape: bf16[9,8,4], index: 1, kind: input, shape index: {}]
  %s2 = inlined_call_operand.vmem [shape: f32[8,1], index: 2, kind: input, shape index: {}]
  %s3 = inlined_call_operand.vmem [shape: bf16[2,8,128], index: 3, kind: output, shape index: {}]
  %s4 = sld [smem:[#allocation0]]
  $region45: #{downscale_forward.1} parent=0
    _
  %s6 = ssub.s32 1, %s4
  %s7 = scalar_select 0, %s6, %s4
  loop: start=0, step=1, limit=4
  $region2: #{downscale_forward.1} parent=0 // loop_pre_header
    _
  $region3: #{downscale_forward.1} parent=0 // loop_header
    %s9 = sphi 0, %s13
    %p10 = scmp.ge.s32.totalorder %s9, 4
    %s16 = sphi 0, %s28
    %s17 = sphi 0, %s24
    %s18 = sphi 0, %s16
    %s19 = sphi 0, %s17
    %s20 = sphi 0, %s18
    %s21 = sphi 0, %s19
    %s31 = sphi 0, %s33
    %s34 = sphi 0, %s31
    %s35 = sphi 0, %s34
    %s51 = sphi 0, %s35
    %s55 = sphi 0, %s55
    %s57 = sphi 0, %s55
    %s58 = sphi 0, %s57
    %s72 = sphi 0, %s58
    %s76 = sphi 0, %s76
    %s78 = sphi 0, %s76
    %s79 = sphi 0, %s78
    %s93 = sphi 0, %s79
    %s101 = sphi 0, %s103
    %s104 = sphi 0, %s101
    %s105 = sphi 0, %s104
    %s121 = sphi 0, %s105
  $region4: #{downscale_forward.1} parent=0 // loop_header_branch
    %12 = sbr.rel (%p10) target = $region8
  $region5: #{downscale_forward.1} parent=0 // loop_body
    %s14 = ssub.s32 %s9, 1
    %s15 = ssub.s32 %s9, 2
    %s22 = sadd.s32 1, %s17
    %p23 = scmp.ge.s32.totalorder %s22, 1
    %s24 = scalar_select %p23, 0, %s22
    %s25 = sadd.s32 1, %s16
    %s26 = scalar_select %p23, %s25, %s16
    %p27 = scmp.ge.s32.totalorder %s26, 2
    %s28 = scalar_select %p27, 0, %s26
    %s29 = ssub.s32 %s16, %s28
    %p30 = scmp.eq.s32.totalorder %s29, 0
    %s32 = sadd.s32 %s31, 1
    %s33 = scalar_select %p30, %s31, %s32
    %p36 = pneg %p30
    %p37 = scmp.eq.s32.totalorder %s9, 1
    %p38 = por %p36, %p37
    %p39 = scmp.ne.s32.totalorder %s31, %s34
    %p40 = scmp.eq.s32.totalorder %s9, 0
    %p41 = por %p39, %p40
    %p42 = scmp.ne.s32.totalorder %s31, %s34
    %p43 = scmp.eq.s32.totalorder %s14, 1
    %p44 = por %p42, %p43
    %p45 = scmp.ne.s32.totalorder %s34, %s35
    %p46 = scmp.eq.s32.totalorder %s14, 0
    %p47 = por %p45, %p46
    %p48 = scmp.ne.s32.totalorder %s34, %s35
    %p49 = scmp.eq.s32.totalorder %s15, 1
    %p50 = por %p48, %p49
    %p52 = scmp.ne.s32.totalorder %s35, %s51
    %p53 = scmp.eq.s32.totalorder %s15, 0
    %p54 = por %p52, %p53
    %s56 = sadd.s32 %s55, 1
    %p59 = scmp.eq.s32.totalorder %s9, 1
    %p60 = scmp.ne.s32.totalorder %s55, %s57
    %p61 = scmp.eq.s32.totalorder %s9, 0
    %p62 = por %p60, %p61
    %p63 = scmp.ne.s32.totalorder %s55, %s57
    %p64 = scmp.eq.s32.totalorder %s14, 1
    %p65 = por %p63, %p64
    %p66 = scmp.ne.s32.totalorder %s57, %s58
    %p67 = scmp.eq.s32.totalorder %s14, 0
    %p68 = por %p66, %p67
    %p69 = scmp.ne.s32.totalorder %s57, %s58
    %p70 = scmp.eq.s32.totalorder %s15, 1
    %p71 = por %p69, %p70
    %p73 = scmp.ne.s32.totalorder %s58, %s72
    %p74 = scmp.eq.s32.totalorder %s15, 0
    %p75 = por %p73, %p74
    %s77 = sadd.s32 %s76, 1
    %p80 = scmp.eq.s32.totalorder %s9, 1
    %p81 = scmp.ne.s32.totalorder %s76, %s78
    %p82 = scmp.eq.s32.totalorder %s9, 0
    %p83 = por %p81, %p82
    %p84 = scmp.ne.s32.totalorder %s76, %s78
    %p85 = scmp.eq.s32.totalorder %s14, 1
    %p86 = por %p84, %p85
    %p87 = scmp.ne.s32.totalorder %s78, %s79
    %p88 = scmp.eq.s32.totalorder %s14, 0
    %p89 = por %p87, %p88
    %p90 = scmp.ne.s32.totalorder %s78, %s79
    %p91 = scmp.eq.s32.totalorder %s15, 1
    %p92 = por %p90, %p91
    %p94 = scmp.ne.s32.totalorder %s79, %s93
    %p95 = scmp.eq.s32.totalorder %s15, 0
    %p96 = por %p94, %p95
    %s97 = ssub.s32 %s16, %s28
    %s98 = ssub.s32 %s17, %s24
    %s99 = sor.u32 %s97, %s98
    %p100 = scmp.eq.s32.totalorder %s99, 0
    %s102 = sadd.s32 %s101, 1
    %s103 = scalar_select %p100, %s101, %s102
    %p106 = pneg %p100
    %p107 = scmp.eq.s32.totalorder %s9, 1
    %p108 = por %p106, %p107
    %p109 = scmp.ne.s32.totalorder %s101, %s104
    %p110 = scmp.eq.s32.totalorder %s9, 0
    %p111 = por %p109, %p110
    %p112 = scmp.ne.s32.totalorder %s101, %s104
    %p113 = scmp.eq.s32.totalorder %s14, 1
    %p114 = por %p112, %p113
    %p115 = scmp.ne.s32.totalorder %s104, %s105
    %p116 = scmp.eq.s32.totalorder %s14, 0
    %p117 = por %p115, %p116
    %p118 = scmp.ne.s32.totalorder %s104, %s105
    %p119 = scmp.eq.s32.totalorder %s15, 1
    %p120 = por %p118, %p119
    %p122 = scmp.ne.s32.totalorder %s105, %s121
    %p123 = scmp.eq.s32.totalorder %s15, 0
    %p124 = por %p122, %p123
    %p125 = scmp.le.s32.totalorder 1, %s9
    %p126 = scmp.lt.s32.totalorder %s9, 3
    %p127 = pnand %p125, %p126
    %p128 = pneg %p127
    // Predicated region
    $region9: #{downscale_forward.1} parent=5 // pred_check
      _
    $region10: #{downscale_forward.1} parent=5 // pred_check_branch
      %130 = sbr.rel (%p127) target = $region12
    $region11: #{downscale_forward.1} parent=5 // pred_region
      %s131 = ssub.s32 %s9, 1
      // Predicated region
      $region13: #{downscale_forward.1} parent=11 // pred_check
        %p132 = pneg %p68
      $region14: #{downscale_forward.1} parent=11 // pred_check_branch
        %134 = sbr.rel (%p132) target = $region16
      $region15: #{downscale_forward.1} parent=11 // pred_region
        _
      $region16: #{downscale_forward.1} parent=11 // pred_fallthru
        _
      // Predicated region
      $region17: #{downscale_forward.1} parent=11 // pred_check
        %p135 = pneg %p89
      $region18: #{downscale_forward.1} parent=11 // pred_check_branch
        %137 = sbr.rel (%p135) target = $region20
      $region19: #{downscale_forward.1} parent=11 // pred_region
        _
      $region20: #{downscale_forward.1} parent=11 // pred_fallthru
        _
    $region12: #{downscale_forward.1} parent=5 // pred_fallthru
      _
    %p138 = scmp.lt.s32.totalorder %s9, 2
    // Predicated region
    $region21: #{downscale_forward.1} parent=5 // pred_check
      %p139 = pneg %p138
    $region22: #{downscale_forward.1} parent=5 // pred_check_branch
      %141 = sbr.rel (%p139) target = $region24
    $region23: #{downscale_forward.1} parent=5 // pred_region
      // Predicated region
      $region25: #{downscale_forward.1} parent=23 // pred_check
        %p142 = pneg %p41
      $region26: #{downscale_forward.1} parent=23 // pred_check_branch
        %144 = sbr.rel (%p142) target = $region28
      $region27: #{downscale_forward.1} parent=23 // pred_region
        %p145 = scmp.lt.s32.totalorder %s16, 1
        %s146 = scalar_select %p145, %s16, 1
        %s147 = smul.addr %s146, 72
        %s148 = smul.addr %s147, 4
        %s149 = scalar_lea.vmem %s0, %s148
      $region28: #{downscale_forward.1} parent=23 // pred_fallthru
        _
    $region24: #{downscale_forward.1} parent=5 // pred_fallthru
      _
    %p150 = scmp.le.s32.totalorder 1, %s9
    %p151 = scmp.lt.s32.totalorder %s9, 3
    %p152 = pnand %p150, %p151
    %p153 = pneg %p152
    // Predicated region
    $region29: #{downscale_forward.1} parent=5 // pred_check
      _
    $region30: #{downscale_forward.1} parent=5 // pred_check_branch
      %155 = sbr.rel (%p152) target = $region32
    $region31: #{downscale_forward.1} parent=5 // pred_region
      %s156 = ssub.s32 %s9, 1
      %p157 = scmp.lt.s32.totalorder %s18, 1
      %s158 = scalar_select %p157, %s18, 1
      %s159 = smul.addr %s158, 72
      %s160 = smul.addr %s159, 4
      %s161 = scalar_lea.vmem %s0, %s160
      %p162 = pneg %p47
      %p163 = pneg %p44
      %p164 = pneg %p68
      %p165 = pneg %p65
      %p166 = pneg %p89
      %p167 = pneg %p86
      %p168 = pneg %p117
      %p169 = pneg %p114
      %p170 = scmp.lt.s32.totalorder %s18, 1
      %s171 = scalar_select %p170, %s18, 1
      %p172 = scmp.lt.s32.totalorder %s19, 0
      %s173 = scalar_select %p172, %s19, 0
      %s174 = sadd.s32 %s173, %s171
      %s175 = smul.addr %s174, 4
      %s176 = scalar_lea.vmem %s3, %s175
      %p177 = scmp.lt.s32.totalorder %s18, 1
      %s178 = scalar_select %p177, %s18, 1
      %s179 = smul.addr %s178, 72
      %s180 = smul.addr %s179, 4
      %s181 = scalar_lea.vmem %s0, %s180
      %p182 = scmp.lt.s32.totalorder %s18, 1
      %s183 = scalar_select %p182, %s18, 1
      %p184 = scmp.lt.s32.totalorder %s19, 0
      %s185 = scalar_select %p184, %s19, 0
      %s186 = sadd.s32 %s185, %s183
      %s187 = smul.addr %s186, 4
      %s188 = scalar_lea.vmem %s3, %s187
      %s190 = smul.u32 %s19, 128
      %s191 = sshra.s32 %s190, 3
      %s192 = sand.u32 %s190, 7
      %s193 = smul.addr %s191, 4
      %s194 = scalar_lea.vmem %s181, %s193
      %v195 = vld [vmem:[%s194] sm:$0xf]
      %v196 = vld [vmem:[%s194 + $0x4] sm:$0xf]
      %v197 = vld [vmem:[%s194 + $0x8] sm:$0xf]
      %v198 = vld [vmem:[%s194 + $0xc] sm:$0xf]
      %v199 = vld [vmem:[%s194 + $0x10] sm:$0xf]
      %v200 = vld [vmem:[%s194 + $0x14] sm:$0xf]
      %v201 = vld [vmem:[%s194 + $0x18] sm:$0xf]
      %v202 = vld [vmem:[%s194 + $0x1c] sm:$0xf]
      %v203 = vld [vmem:[%s194 + $0x20] sm:$0xf]
      %v204 = vld [vmem:[%s194 + $0x24] sm:$0xf]
      %v205 = vld [vmem:[%s194 + $0x28] sm:$0xf]
      %v206 = vld [vmem:[%s194 + $0x2c] sm:$0xf]
      %v207 = vld [vmem:[%s194 + $0x30] sm:$0xf]
      %v208 = vld [vmem:[%s194 + $0x34] sm:$0xf]
      %v209 = vld [vmem:[%s194 + $0x38] sm:$0xf]
      %v210 = vld [vmem:[%s194 + $0x3c] sm:$0xf]
      %v211 = vld [vmem:[%s194 + $0x40] sm:$0xf]
      %v212 = vld [vmem:[%s194 + $0x44] sm:$0xf]
      %s213 = sadd.s32 %s191, 18
      %s214 = smul.addr %s213, 4
      %s215 = scalar_lea.vmem %s181, %s214
      %v216 = vld [vmem:[%s215] sm:$0xf]
      %v217 = vld [vmem:[%s215 + $0x4] sm:$0xf]
      %v218 = vld [vmem:[%s215 + $0x8] sm:$0xf]
      %v219 = vld [vmem:[%s215 + $0xc] sm:$0xf]
      %v220 = vld [vmem:[%s215 + $0x10] sm:$0xf]
      %v221 = vld [vmem:[%s215 + $0x14] sm:$0xf]
      %v222 = vld [vmem:[%s215 + $0x18] sm:$0xf]
      %v223 = vld [vmem:[%s215 + $0x1c] sm:$0xf]
      %v224 = vld [vmem:[%s215 + $0x20] sm:$0xf]
      %v225 = vld [vmem:[%s215 + $0x24] sm:$0xf]
      %v226 = vld [vmem:[%s215 + $0x28] sm:$0xf]
      %v227 = vld [vmem:[%s215 + $0x2c] sm:$0xf]
      %v228 = vld [vmem:[%s215 + $0x30] sm:$0xf]
      %v229 = vld [vmem:[%s215 + $0x34] sm:$0xf]
      %v230 = vld [vmem:[%s215 + $0x38] sm:$0xf]
      %v231 = vld [vmem:[%s215 + $0x3c] sm:$0xf]
      %v232 = vld [vmem:[%s215 + $0x40] sm:$0xf]
      %v233 = vld [vmem:[%s215 + $0x44] sm:$0xf]
      %s234 = sadd.s32 %s191, 36
      %s235 = smul.addr %s234, 4
      %s236 = scalar_lea.vmem %s181, %s235
      %v237 = vld [vmem:[%s236] sm:$0xf]
      %v238 = vld [vmem:[%s236 + $0x4] sm:$0xf]
      %v239 = vld [vmem:[%s236 + $0x8] sm:$0xf]
      %v240 = vld [vmem:[%s236 + $0xc] sm:$0xf]
      %v241 = vld [vmem:[%s236 + $0x10] sm:$0xf]
      %v242 = vld [vmem:[%s236 + $0x14] sm:$0xf]
      %v243 = vld [vmem:[%s236 + $0x18] sm:$0xf]
      %v244 = vld [vmem:[%s236 + $0x1c] sm:$0xf]
      %v245 = vld [vmem:[%s236 + $0x20] sm:$0xf]
      %v246 = vld [vmem:[%s236 + $0x24] sm:$0xf]
      %v247 = vld [vmem:[%s236 + $0x28] sm:$0xf]
      %v248 = vld [vmem:[%s236 + $0x2c] sm:$0xf]
      %v249 = vld [vmem:[%s236 + $0x30] sm:$0xf]
      %v250 = vld [vmem:[%s236 + $0x34] sm:$0xf]
      %v251 = vld [vmem:[%s236 + $0x38] sm:$0xf]
      %v252 = vld [vmem:[%s236 + $0x3c] sm:$0xf]
      %v253 = vld [vmem:[%s236 + $0x40] sm:$0xf]
      %s254 = sadd.s32 %s191, 54
      %s255 = smul.addr %s254, 4
      %s256 = scalar_lea.vmem %s181, %s255
      %v257 = vld [vmem:[%s256] sm:$0xf]
      %v258 = vld [vmem:[%s256 + $0x4] sm:$0xf]
      %v259 = vld [vmem:[%s256 + $0x8] sm:$0xf]
      %v260 = vld [vmem:[%s256 + $0xc] sm:$0xf]
      %v261 = vld [vmem:[%s256 + $0x10] sm:$0xf]
      %v262 = vld [vmem:[%s256 + $0x14] sm:$0xf]
      %v263 = vld [vmem:[%s256 + $0x18] sm:$0xf]
      %v264 = vld [vmem:[%s256 + $0x1c] sm:$0xf]
      %v265 = vld [vmem:[%s256 + $0x20] sm:$0xf]
      %v266 = vld [vmem:[%s256 + $0x24] sm:$0xf]
      %v267 = vld [vmem:[%s256 + $0x28] sm:$0xf]
      %v268 = vld [vmem:[%s256 + $0x2c] sm:$0xf]
      %v269 = vld [vmem:[%s256 + $0x30] sm:$0xf]
      %v270 = vld [vmem:[%s256 + $0x34] sm:$0xf]
      %v271 = vld [vmem:[%s256 + $0x38] sm:$0xf]
      %v272 = vld [vmem:[%s256 + $0x3c] sm:$0xf]
      %v273 = vld [vmem:[%s1] sm:$0xf]
      %s274 = scalar_lea.vmem %s1, 4
      %v275 = vld [vmem:[%s274] sm:$0xf]
      %v292 = vunpack.c.l.b16 %v216
      %v293 = vunpack.c.l.b16 %v217
      %v294 = vunpack.c.l.b16 %v218
      %v295 = vunpack.c.l.b16 %v219
      %v296 = vunpack.c.l.b16 %v220
      %v297 = vunpack.c.l.b16 %v221
      %v298 = vunpack.c.l.b16 %v222
      %v299 = vunpack.c.l.b16 %v223
      %v300 = vunpack.c.l.b16 %v224
      %v301 = vunpack.c.l.b16 %v225
      %v302 = vunpack.c.l.b16 %v226
      %v303 = vunpack.c.l.b16 %v227
      %v304 = vunpack.c.l.b16 %v228
      %v305 = vunpack.c.l.b16 %v229
      %v306 = vunpack.c.l.b16 %v230
      %v307 = vunpack.c.l.b16 %v231
      %v308 = vpack.c.b16 %v293, %v292
      %v309 = vpack.c.b16 %v295, %v294
      %v310 = vpack.c.b16 %v297, %v296
      %v311 = vpack.c.b16 %v299, %v298
      %v312 = vpack.c.b16 %v301, %v300
      %v313 = vpack.c.b16 %v303, %v302
      %v314 = vpack.c.b16 %v305, %v304
      %v315 = vpack.c.b16 %v307, %v306
      %vm316 = vcmask 31744
      %v318 = vsel %vm316, %v275, 0
      %v321 = vsel %vm316, %v308, 0
      %v324 = vsel %vm316, %v309, 0
      %v327 = vsel %vm316, %v310, 0
      %v330 = vsel %vm316, %v311, 0
      %v333 = vsel %vm316, %v312, 0
      %v336 = vsel %vm316, %v313, 0
      %v339 = vsel %vm316, %v314, 0
      %v342 = vsel %vm316, %v315, 0
      %344 = vmatprep.subr.bf16.mxu0 0
      %345 = vmatpush1.bf16.xpose.msra.mxu0 %v342
      %346 = vmatprep.subr.bf16.mxu0 0
      %347 = vmatpush1.bf16.xpose.msra.mxu0 %v339
      %348 = vmatprep.subr.bf16.mxu0 0
      %349 = vmatpush1.bf16.xpose.msra.mxu0 %v336
      %350 = vmatprep.subr.bf16.mxu0 0
      %351 = vmatpush1.bf16.xpose.msra.mxu0 %v333
      %352 = vmatprep.subr.bf16.mxu0 0
      %353 = vmatpush1.bf16.xpose.msra.mxu0 %v330
      %354 = vmatprep.subr.bf16.mxu0 0
      %355 = vmatpush1.bf16.xpose.msra.mxu0 %v327
      %356 = vmatprep.subr.bf16.mxu0 0
      %357 = vmatpush1.bf16.xpose.msra.mxu0 %v324
      %358 = vmatprep.subr.bf16.mxu0 0
      %359 = vmatpush1.bf16.xpose.msra.mxu0 %v321
      %360 = vmatprep.subr.bf16.mxu0 0
      %361 = vmatpush2.bf16.xpose.msra.mxu0 0
      %362 = vmatprep.subr.bf16.mxu0 0
      %363 = vmatpush2.bf16.xpose.msra.mxu0 0
      %364 = vmatprep.subr.bf16.mxu0 0
      %365 = vmatpush2.bf16.xpose.msra.mxu0 0
      %366 = vmatprep.subr.bf16.mxu0 0
      %367 = vmatpush2.bf16.xpose.msra.mxu0 0
      %368 = vmatprep.subr.bf16.mxu0 0
      %369 = vmatpush2.bf16.xpose.msra.mxu0 0
      %370 = vmatprep.subr.bf16.mxu0 0
      %371 = vmatpush2.bf16.xpose.msra.mxu0 0
      %372 = vmatprep.subr.bf16.mxu0 0
      %373 = vmatpush2.bf16.xpose.msra.mxu0 0
      %374 = vmatprep.subr.bf16.mxu0 0
      %375 = vmatpush2.bf16.xpose.msra.mxu0 0
      %376 = vmatprep.mubr.bf16.mxu0 0
      %377 = vmatmul.mubr.bf16.gmra.mxu0 %v318
      %v378 = vpop.f32.mrf.mxu0
      %v379 = vadd.f32 0.0, %v378
      %v380 = vpop.f32.mrf.mxu0
      %v381 = vpop.f32.mrf.mxu0
      %v382 = vpop.f32.mrf.mxu0
      %383 = vdwg.mxu0
      %v400 = vunpack.c.l.b16 %v195
      %v401 = vunpack.c.l.b16 %v196
      %v402 = vunpack.c.l.b16 %v197
      %v403 = vunpack.c.l.b16 %v198
      %v404 = vunpack.c.l.b16 %v199
      %v405 = vunpack.c.l.b16 %v200
      %v406 = vunpack.c.l.b16 %v201
      %v407 = vunpack.c.l.b16 %v202
      %v408 = vunpack.c.l.b16 %v203
      %v409 = vunpack.c.l.b16 %v204
      %v410 = vunpack.c.l.b16 %v205
      %v411 = vunpack.c.l.b16 %v206
      %v412 = vunpack.c.l.b16 %v207
      %v413 = vunpack.c.l.b16 %v208
      %v414 = vunpack.c.l.b16 %v209
      %v415 = vunpack.c.l.b16 %v210
      %v416 = vpack.c.b16 %v401, %v400
      %v417 = vpack.c.b16 %v403, %v402
      %v418 = vpack.c.b16 %v405, %v404
      %v419 = vpack.c.b16 %v407, %v406
      %v420 = vpack.c.b16 %v409, %v408
      %v421 = vpack.c.b16 %v411, %v410
      %v422 = vpack.c.b16 %v413, %v412
      %v423 = vpack.c.b16 %v415, %v414
      %v425 = vsel %vm316, %v273, 0
      %v428 = vsel %vm316, %v416, 0
      %v431 = vsel %vm316, %v417, 0
      %v434 = vsel %vm316, %v418, 0
      %v437 = vsel %vm316, %v419, 0
      %v440 = vsel %vm316, %v420, 0
      %v443 = vsel %vm316, %v421, 0
      %v446 = vsel %vm316, %v422, 0
      %v449 = vsel %vm316, %v423, 0
      %451 = vmatprep.subr.bf16.mxu0 0
      %452 = vmatpush1.bf16.xpose.msra.mxu0 %v449
      %453 = vmatprep.subr.bf16.mxu0 0
      %454 = vmatpush1.bf16.xpose.msra.mxu0 %v446
      %455 = vmatprep.subr.bf16.mxu0 0
      %456 = vmatpush1.bf16.xpose.msra.mxu0 %v443
      %457 = vmatprep.subr.bf16.mxu0 0
      %458 = vmatpush1.bf16.xpose.msra.mxu0 %v440
      %459 = vmatprep.subr.bf16.mxu0 0
      %460 = vmatpush1.bf16.xpose.msra.mxu0 %v437
      %461 = vmatprep.subr.bf16.mxu0 0
      %462 = vmatpush1.bf16.xpose.msra.mxu0 %v434
      %463 = vmatprep.subr.bf16.mxu0 0
      %464 = vmatpush1.bf16.xpose.msra.mxu0 %v431
      %465 = vmatprep.subr.bf16.mxu0 0
      %466 = vmatpush1.bf16.xpose.msra.mxu0 %v428
      %467 = vmatprep.subr.bf16.mxu0 0
      %468 = vmatpush2.bf16.xpose.msra.mxu0 0
      %469 = vmatprep.subr.bf16.mxu0 0
      %470 = vmatpush2.bf16.xpose.msra.mxu0 0
      %471 = vmatprep.subr.bf16.mxu0 0
      %472 = vmatpush2.bf16.xpose.msra.mxu0 0
      %473 = vmatprep.subr.bf16.mxu0 0
      %474 = vmatpush2.bf16.xpose.msra.mxu0 0
      %475 = vmatprep.subr.bf16.mxu0 0
      %476 = vmatpush2.bf16.xpose.msra.mxu0 0
      %477 = vmatprep.subr.bf16.mxu0 0
      %478 = vmatpush2.bf16.xpose.msra.mxu0 0
      %479 = vmatprep.subr.bf16.mxu0 0
      %480 = vmatpush2.bf16.xpose.msra.mxu0 0
      %481 = vmatprep.subr.bf16.mxu0 0
      %482 = vmatpush2.bf16.xpose.msra.mxu0 0
      %483 = vmatprep.mubr.bf16.mxu0 0
      %484 = vmatmul.mubr.bf16.gmra.mxu0 %v425
      %v485 = vpop.f32.mrf.mxu0
      %v486 = vadd.f32 %v379, %v485
      %v487 = vpop.f32.mrf.mxu0
      %v488 = vpop.f32.mrf.mxu0
      %v489 = vpop.f32.mrf.mxu0
      %490 = vdwg.mxu0
      %s491 = scalar_lea.vmem %s1, 8
      %v492 = vld [vmem:[%s491] sm:$0xf]
      %v494 = vunpack.c.l.b16 %v211
      %v495 = vpack.c.b16 %v494, %v494
      %vm496 = vsmask.f32 7424
      %v497 = vshrl.u32 %v416, 16
      %v499 = vshll.u32 %v416, 16
      %v501 = vrot.slane %v499, 1
      %v502 = vor.u32 %v497, %v501
      %v503 = vshll.u32 %v417, 16
      %v505 = vrot.slane %v503, 1
      %v506 = vsel %vm496, %v502, %v505
      %v507 = vshrl.u32 %v417, 16
      %v509 = vor.u32 %v507, %v505
      %v510 = vshll.u32 %v418, 16
      %v512 = vrot.slane %v510, 1
      %v513 = vsel %vm496, %v509, %v512
      %v514 = vshrl.u32 %v418, 16
      %v516 = vor.u32 %v514, %v512
      %v517 = vshll.u32 %v419, 16
      %v519 = vrot.slane %v517, 1
      %v520 = vsel %vm496, %v516, %v519
      %v521 = vshrl.u32 %v419, 16
      %v523 = vor.u32 %v521, %v519
      %v524 = vshll.u32 %v420, 16
      %v526 = vrot.slane %v524, 1
      %v527 = vsel %vm496, %v523, %v526
      %v528 = vshrl.u32 %v420, 16
      %v530 = vor.u32 %v528, %v526
      %v531 = vshll.u32 %v421, 16
      %v533 = vrot.slane %v531, 1
      %v534 = vsel %vm496, %v530, %v533
      %v535 = vshrl.u32 %v421, 16
      %v537 = vor.u32 %v535, %v533
      %v538 = vshll.u32 %v422, 16
      %v540 = vrot.slane %v538, 1
      %v541 = vsel %vm496, %v537, %v540
      %v542 = vshrl.u32 %v422, 16
      %v544 = vor.u32 %v542, %v540
      %v545 = vshll.u32 %v423, 16
      %v547 = vrot.slane %v545, 1
      %v548 = vsel %vm496, %v544, %v547
      %v549 = vshrl.u32 %v423, 16
      %v551 = vor.u32 %v549, %v547
      %v553 = vshll.u32 %v495, 16
      %v555 = vrot.slane %v553, 1
      %v556 = vsel %vm496, %v551, %v555
      %v558 = vsel %vm316, %v492, 0
      %v561 = vsel %vm316, %v506, 0
      %v564 = vsel %vm316, %v513, 0
      %v567 = vsel %vm316, %v520, 0
      %v570 = vsel %vm316, %v527, 0
      %v573 = vsel %vm316, %v534, 0
      %v576 = vsel %vm316, %v541, 0
      %v579 = vsel %vm316, %v548, 0
      %v582 = vsel %vm316, %v556, 0
      %584 = vmatprep.subr.bf16.mxu0 0
      %585 = vmatpush1.bf16.xpose.msra.mxu0 %v582
      %586 = vmatprep.subr.bf16.mxu0 0
      %587 = vmatpush1.bf16.xpose.msra.mxu0 %v579
      %588 = vmatprep.subr.bf16.mxu0 0
      %589 = vmatpush1.bf16.xpose.msra.mxu0 %v576
      %590 = vmatprep.subr.bf16.mxu0 0
      %591 = vmatpush1.bf16.xpose.msra.mxu0 %v573
      %592 = vmatprep.subr.bf16.mxu0 0
      %593 = vmatpush1.bf16.xpose.msra.mxu0 %v570
      %594 = vmatprep.subr.bf16.mxu0 0
      %595 = vmatpush1.bf16.xpose.msra.mxu0 %v567
      %596 = vmatprep.subr.bf16.mxu0 0
      %597 = vmatpush1.bf16.xpose.msra.mxu0 %v564
      %598 = vmatprep.subr.bf16.mxu0 0
      %599 = vmatpush1.bf16.xpose.msra.mxu0 %v561
      %600 = vmatprep.subr.bf16.mxu0 0
      %601 = vmatpush2.bf16.xpose.msra.mxu0 0
      %602 = vmatprep.subr.bf16.mxu0 0
      %603 = vmatpush2.bf16.xpose.msra.mxu0 0
      %604 = vmatprep.subr.bf16.mxu0 0
      %605 = vmatpush2.bf16.xpose.msra.mxu0 0
      %606 = vmatprep.subr.bf16.mxu0 0
      %607 = vmatpush2.bf16.xpose.msra.mxu0 0
      %608 = vmatprep.subr.bf16.mxu0 0
      %609 = vmatpush2.bf16.xpose.msra.mxu0 0
      %610 = vmatprep.subr.bf16.mxu0 0
      %611 = vmatpush2.bf16.xpose.msra.mxu0 0
      %612 = vmatprep.subr.bf16.mxu0 0
      %613 = vmatpush2.bf16.xpose.msra.mxu0 0
      %614 = vmatprep.subr.bf16.mxu0 0
      %615 = vmatpush2.bf16.xpose.msra.mxu0 0
      %616 = vmatprep.mubr.bf16.mxu0 0
      %617 = vmatmul.mubr.bf16.gmra.mxu0 %v558
      %v618 = vpop.f32.mrf.mxu0
      %v619 = vadd.f32 0.0, %v618
      %v620 = vpop.f32.mrf.mxu0
      %v621 = vpop.f32.mrf.mxu0
      %v622 = vpop.f32.mrf.mxu0
      %623 = vdwg.mxu0
      %v624 = vadd.f32 %v486, %v619
      %s625 = scalar_lea.vmem %s1, 12
      %v626 = vld [vmem:[%s625] sm:$0xf]
      %v643 = vunpack.c.l.b16 %v237
      %v644 = vunpack.c.l.b16 %v238
      %v645 = vunpack.c.l.b16 %v239
      %v646 = vunpack.c.l.b16 %v240
      %v647 = vunpack.c.l.b16 %v241
      %v648 = vunpack.c.l.b16 %v242
      %v649 = vunpack.c.l.b16 %v243
      %v650 = vunpack.c.l.b16 %v244
      %v651 = vunpack.c.l.b16 %v245
      %v652 = vunpack.c.l.b16 %v246
      %v653 = vunpack.c.l.b16 %v247
      %v654 = vunpack.c.l.b16 %v248
      %v655 = vunpack.c.l.b16 %v249
      %v656 = vunpack.c.l.b16 %v250
      %v657 = vunpack.c.l.b16 %v251
      %v658 = vunpack.c.l.b16 %v252
      %v659 = vpack.c.b16 %v644, %v643
      %v660 = vpack.c.b16 %v646, %v645
      %v661 = vpack.c.b16 %v648, %v647
      %v662 = vpack.c.b16 %v650, %v649
      %v663 = vpack.c.b16 %v652, %v651
      %v664 = vpack.c.b16 %v654, %v653
      %v665 = vpack.c.b16 %v656, %v655
      %v666 = vpack.c.b16 %v658, %v657
      %v668 = vsel %vm316, %v626, 0
      %v671 = vsel %vm316, %v659, 0
      %v674 = vsel %vm316, %v660, 0
      %v677 = vsel %vm316, %v661, 0
      %v680 = vsel %vm316, %v662, 0
      %v683 = vsel %vm316, %v663, 0
      %v686 = vsel %vm316, %v664, 0
      %v689 = vsel %vm316, %v665, 0
      %v692 = vsel %vm316, %v666, 0
      %694 = vmatprep.subr.bf16.mxu0 0
      %695 = vmatpush1.bf16.xpose.msra.mxu0 %v692
      %696 = vmatprep.subr.bf16.mxu0 0
      %697 = vmatpush1.bf16.xpose.msra.mxu0 %v689
      %698 = vmatprep.subr.bf16.mxu0 0
      %699 = vmatpush1.bf16.xpose.msra.mxu0 %v686
      %700 = vmatprep.subr.bf16.mxu0 0
      %701 = vmatpush1.bf16.xpose.msra.mxu0 %v683
      %702 = vmatprep.subr.bf16.mxu0 0
      %703 = vmatpush1.bf16.xpose.msra.mxu0 %v680
      %704 = vmatprep.subr.bf16.mxu0 0
      %705 = vmatpush1.bf16.xpose.msra.mxu0 %v677
      %706 = vmatprep.subr.bf16.mxu0 0
      %707 = vmatpush1.bf16.xpose.msra.mxu0 %v674
      %708 = vmatprep.subr.bf16.mxu0 0
      %709 = vmatpush1.bf16.xpose.msra.mxu0 %v671
      %710 = vmatprep.subr.bf16.mxu0 0
      %711 = vmatpush2.bf16.xpose.msra.mxu0 0
      %712 = vmatprep.subr.bf16.mxu0 0
      %713 = vmatpush2.bf16.xpose.msra.mxu0 0
      %714 = vmatprep.subr.bf16.mxu0 0
      %715 = vmatpush2.bf16.xpose.msra.mxu0 0
      %716 = vmatprep.subr.bf16.mxu0 0
      %717 = vmatpush2.bf16.xpose.msra.mxu0 0
      %718 = vmatprep.subr.bf16.mxu0 0
      %719 = vmatpush2.bf16.xpose.msra.mxu0 0
      %720 = vmatprep.subr.bf16.mxu0 0
      %721 = vmatpush2.bf16.xpose.msra.mxu0 0
      %722 = vmatprep.subr.bf16.mxu0 0
      %723 = vmatpush2.bf16.xpose.msra.mxu0 0
      %724 = vmatprep.subr.bf16.mxu0 0
      %725 = vmatpush2.bf16.xpose.msra.mxu0 0
      %726 = vmatprep.mubr.bf16.mxu0 0
      %727 = vmatmul.mubr.bf16.gmra.mxu0 %v668
      %v728 = vpop.f32.mrf.mxu0
      %v729 = vadd.f32 0.0, %v728
      %v730 = vpop.f32.mrf.mxu0
      %v731 = vpop.f32.mrf.mxu0
      %v732 = vpop.f32.mrf.mxu0
      %733 = vdwg.mxu0
      %v734 = vadd.f32 %v624, %v729
      %s735 = scalar_lea.vmem %s1, 16
      %v736 = vld [vmem:[%s735] sm:$0xf]
      %v753 = vunpack.c.l.b16 %v257
      %v754 = vunpack.c.l.b16 %v258
      %v755 = vunpack.c.l.b16 %v259
      %v756 = vunpack.c.l.b16 %v260
      %v757 = vunpack.c.l.b16 %v261
      %v758 = vunpack.c.l.b16 %v262
      %v759 = vunpack.c.l.b16 %v263
      %v760 = vunpack.c.l.b16 %v264
      %v761 = vunpack.c.l.b16 %v265
      %v762 = vunpack.c.l.b16 %v266
      %v763 = vunpack.c.l.b16 %v267
      %v764 = vunpack.c.l.b16 %v268
      %v765 = vunpack.c.l.b16 %v269
      %v766 = vunpack.c.l.b16 %v270
      %v767 = vunpack.c.l.b16 %v271
      %v768 = vunpack.c.l.b16 %v272
      %v769 = vpack.c.b16 %v754, %v753
      %v770 = vpack.c.b16 %v756, %v755
      %v771 = vpack.c.b16 %v758, %v757
      %v772 = vpack.c.b16 %v760, %v759
      %v773 = vpack.c.b16 %v762, %v761
      %v774 = vpack.c.b16 %v764, %v763
      %v775 = vpack.c.b16 %v766, %v765
      %v776 = vpack.c.b16 %v768, %v767
      %v778 = vsel %vm316, %v736, 0
      %v781 = vsel %vm316, %v769, 0
      %v784 = vsel %vm316, %v770, 0
      %v787 = vsel %vm316, %v771, 0
      %v790 = vsel %vm316, %v772, 0
      %v793 = vsel %vm316, %v773, 0
      %v796 = vsel %vm316, %v774, 0
      %v799 = vsel %vm316, %v775, 0
      %v802 = vsel %vm316, %v776, 0
      %804 = vmatprep.subr.bf16.mxu0 0
      %805 = vmatpush1.bf16.xpose.msra.mxu0 %v802
      %806 = vmatprep.subr.bf16.mxu0 0
      %807 = vmatpush1.bf16.xpose.msra.mxu0 %v799
      %808 = vmatprep.subr.bf16.mxu0 0
      %809 = vmatpush1.bf16.xpose.msra.mxu0 %v796
      %810 = vmatprep.subr.bf16.mxu0 0
      %811 = vmatpush1.bf16.xpose.msra.mxu0 %v793
      %812 = vmatprep.subr.bf16.mxu0 0
      %813 = vmatpush1.bf16.xpose.msra.mxu0 %v790
      %814 = vmatprep.subr.bf16.mxu0 0
      %815 = vmatpush1.bf16.xpose.msra.mxu0 %v787
      %816 = vmatprep.subr.bf16.mxu0 0
      %817 = vmatpush1.bf16.xpose.msra.mxu0 %v784
      %818 = vmatprep.subr.bf16.mxu0 0
      %819 = vmatpush1.bf16.xpose.msra.mxu0 %v781
      %820 = vmatprep.subr.bf16.mxu0 0
      %821 = vmatpush2.bf16.xpose.msra.mxu0 0
      %822 = vmatprep.subr.bf16.mxu0 0
      %823 = vmatpush2.bf16.xpose.msra.mxu0 0
      %824 = vmatprep.subr.bf16.mxu0 0
      %825 = vmatpush2.bf16.xpose.msra.mxu0 0
      %826 = vmatprep.subr.bf16.mxu0 0
      %827 = vmatpush2.bf16.xpose.msra.mxu0 0
      %828 = vmatprep.subr.bf16.mxu0 0
      %829 = vmatpush2.bf16.xpose.msra.mxu0 0
      %830 = vmatprep.subr.bf16.mxu0 0
      %831 = vmatpush2.bf16.xpose.msra.mxu0 0
      %832 = vmatprep.subr.bf16.mxu0 0
      %833 = vmatpush2.bf16.xpose.msra.mxu0 0
      %834 = vmatprep.subr.bf16.mxu0 0
      %835 = vmatpush2.bf16.xpose.msra.mxu0 0
      %836 = vmatprep.mubr.bf16.mxu0 0
      %837 = vmatmul.mubr.bf16.gmra.mxu0 %v778
      %v838 = vpop.f32.mrf.mxu0
      %v839 = vadd.f32 0.0, %v838
      %v840 = vpop.f32.mrf.mxu0
      %v841 = vpop.f32.mrf.mxu0
      %v842 = vpop.f32.mrf.mxu0
      %843 = vdwg.mxu0
      %v844 = vadd.f32 %v734, %v839
      %s845 = scalar_lea.vmem %s1, 20
      %v846 = vld [vmem:[%s845] sm:$0xf]
      %v848 = vunpack.c.l.b16 %v253
      %v849 = vpack.c.b16 %v848, %v848
      %v850 = vshrl.u32 %v659, 16
      %v852 = vshll.u32 %v659, 16
      %v854 = vrot.slane %v852, 1
      %v855 = vor.u32 %v850, %v854
      %v856 = vshll.u32 %v660, 16
      %v858 = vrot.slane %v856, 1
      %v859 = vsel %vm496, %v855, %v858
      %v860 = vshrl.u32 %v660, 16
      %v862 = vor.u32 %v860, %v858
      %v863 = vshll.u32 %v661, 16
      %v865 = vrot.slane %v863, 1
      %v866 = vsel %vm496, %v862, %v865
      %v867 = vshrl.u32 %v661, 16
      %v869 = vor.u32 %v867, %v865
      %v870 = vshll.u32 %v662, 16
      %v872 = vrot.slane %v870, 1
      %v873 = vsel %vm496, %v869, %v872
      %v874 = vshrl.u32 %v662, 16
      %v876 = vor.u32 %v874, %v872
      %v877 = vshll.u32 %v663, 16
      %v879 = vrot.slane %v877, 1
      %v880 = vsel %vm496, %v876, %v879
      %v881 = vshrl.u32 %v663, 16
      %v883 = vor.u32 %v881, %v879
      %v884 = vshll.u32 %v664, 16
      %v886 = vrot.slane %v884, 1
      %v887 = vsel %vm496, %v883, %v886
      %v888 = vshrl.u32 %v664, 16
      %v890 = vor.u32 %v888, %v886
      %v891 = vshll.u32 %v665, 16
      %v893 = vrot.slane %v891, 1
      %v894 = vsel %vm496, %v890, %v893
      %v895 = vshrl.u32 %v665, 16
      %v897 = vor.u32 %v895, %v893
      %v898 = vshll.u32 %v666, 16
      %v900 = vrot.slane %v898, 1
      %v901 = vsel %vm496, %v897, %v900
      %v902 = vshrl.u32 %v666, 16
      %v904 = vor.u32 %v902, %v900
      %v906 = vshll.u32 %v849, 16
      %v908 = vrot.slane %v906, 1
      %v909 = vsel %vm496, %v904, %v908
      %v911 = vsel %vm316, %v846, 0
      %v914 = vsel %vm316, %v859, 0
      %v917 = vsel %vm316, %v866, 0
      %v920 = vsel %vm316, %v873, 0
      %v923 = vsel %vm316, %v880, 0
      %v926 = vsel %vm316, %v887, 0
      %v929 = vsel %vm316, %v894, 0
      %v932 = vsel %vm316, %v901, 0
      %v935 = vsel %vm316, %v909, 0
      %937 = vmatprep.subr.bf16.mxu0 0
      %938 = vmatpush1.bf16.xpose.msra.mxu0 %v935
      %939 = vmatprep.subr.bf16.mxu0 0
      %940 = vmatpush1.bf16.xpose.msra.mxu0 %v932
      %941 = vmatprep.subr.bf16.mxu0 0
      %942 = vmatpush1.bf16.xpose.msra.mxu0 %v929
      %943 = vmatprep.subr.bf16.mxu0 0
      %944 = vmatpush1.bf16.xpose.msra.mxu0 %v926
      %945 = vmatprep.subr.bf16.mxu0 0
      %946 = vmatpush1.bf16.xpose.msra.mxu0 %v923
      %947 = vmatprep.subr.bf16.mxu0 0
      %948 = vmatpush1.bf16.xpose.msra.mxu0 %v920
      %949 = vmatprep.subr.bf16.mxu0 0
      %950 = vmatpush1.bf16.xpose.msra.mxu0 %v917
      %951 = vmatprep.subr.bf16.mxu0 0
      %952 = vmatpush1.bf16.xpose.msra.mxu0 %v914
      %953 = vmatprep.subr.bf16.mxu0 0
      %954 = vmatpush2.bf16.xpose.msra.mxu0 0
      %955 = vmatprep.subr.bf16.mxu0 0
      %956 = vmatpush2.bf16.xpose.msra.mxu0 0
      %957 = vmatprep.subr.bf16.mxu0 0
      %958 = vmatpush2.bf16.xpose.msra.mxu0 0
      %959 = vmatprep.subr.bf16.mxu0 0
      %960 = vmatpush2.bf16.xpose.msra.mxu0 0
      %961 = vmatprep.subr.bf16.mxu0 0
      %962 = vmatpush2.bf16.xpose.msra.mxu0 0
      %963 = vmatprep.subr.bf16.mxu0 0
      %964 = vmatpush2.bf16.xpose.msra.mxu0 0
      %965 = vmatprep.subr.bf16.mxu0 0
      %966 = vmatpush2.bf16.xpose.msra.mxu0 0
      %967 = vmatprep.subr.bf16.mxu0 0
      %968 = vmatpush2.bf16.xpose.msra.mxu0 0
      %969 = vmatprep.mubr.bf16.mxu0 0
      %970 = vmatmul.mubr.bf16.gmra.mxu0 %v911
      %v971 = vpop.f32.mrf.mxu0
      %v972 = vadd.f32 0.0, %v971
      %v973 = vpop.f32.mrf.mxu0
      %v974 = vpop.f32.mrf.mxu0
      %v975 = vpop.f32.mrf.mxu0
      %976 = vdwg.mxu0
      %v977 = vadd.f32 %v844, %v972
      %s978 = scalar_lea.vmem %s1, 24
      %v979 = vld [vmem:[%s978] sm:$0xf]
      %v981 = vunpack.c.l.b16 %v212
      %v982 = vpack.c.b16 %v402, %v401
      %v983 = vpack.c.b16 %v404, %v403
      %v984 = vpack.c.b16 %v406, %v405
      %v985 = vpack.c.b16 %v408, %v407
      %v986 = vpack.c.b16 %v410, %v409
      %v987 = vpack.c.b16 %v412, %v411
      %v988 = vpack.c.b16 %v414, %v413
      %v989 = vpack.c.b16 %v494, %v415
      %v990 = vpack.c.b16 %v981, %v981
      %v992 = vshrl.u32 %v982, 16
      %v994 = vshll.u32 %v982, 16
      %v996 = vrot.slane %v994, 1
      %v997 = vor.u32 %v992, %v996
      %v999 = vshll.u32 %v983, 16
      %v1001 = vrot.slane %v999, 1
      %v1002 = vsel %vm496, %v997, %v1001
      %v1003 = vshrl.u32 %v983, 16
      %v1005 = vor.u32 %v1003, %v1001
      %v1007 = vshll.u32 %v984, 16
      %v1009 = vrot.slane %v1007, 1
      %v1010 = vsel %vm496, %v1005, %v1009
      %v1011 = vshrl.u32 %v984, 16
      %v1013 = vor.u32 %v1011, %v1009
      %v1015 = vshll.u32 %v985, 16
      %v1017 = vrot.slane %v1015, 1
      %v1018 = vsel %vm496, %v1013, %v1017
      %v1019 = vshrl.u32 %v985, 16
      %v1021 = vor.u32 %v1019, %v1017
      %v1023 = vshll.u32 %v986, 16
      %v1025 = vrot.slane %v1023, 1
      %v1026 = vsel %vm496, %v1021, %v1025
      %v1027 = vshrl.u32 %v986, 16
      %v1029 = vor.u32 %v1027, %v1025
      %v1031 = vshll.u32 %v987, 16
      %v1033 = vrot.slane %v1031, 1
      %v1034 = vsel %vm496, %v1029, %v1033
      %v1035 = vshrl.u32 %v987, 16
      %v1037 = vor.u32 %v1035, %v1033
      %v1039 = vshll.u32 %v988, 16
      %v1041 = vrot.slane %v1039, 1
      %v1042 = vsel %vm496, %v1037, %v1041
      %v1043 = vshrl.u32 %v988, 16
      %v1045 = vor.u32 %v1043, %v1041
      %v1047 = vshll.u32 %v989, 16
      %v1049 = vrot.slane %v1047, 1
      %v1050 = vsel %vm496, %v1045, %v1049
      %v1051 = vshrl.u32 %v989, 16
      %v1053 = vor.u32 %v1051, %v1049
      %v1055 = vshll.u32 %v990, 16
      %v1057 = vrot.slane %v1055, 1
      %v1058 = vsel %vm496, %v1053, %v1057
      %v1060 = vsel %vm316, %v979, 0
      %v1063 = vsel %vm316, %v1002, 0
      %v1066 = vsel %vm316, %v1010, 0
      %v1069 = vsel %vm316, %v1018, 0
      %v1072 = vsel %vm316, %v1026, 0
      %v1075 = vsel %vm316, %v1034, 0
      %v1078 = vsel %vm316, %v1042, 0
      %v1081 = vsel %vm316, %v1050, 0
      %v1084 = vsel %vm316, %v1058, 0
      %1086 = vmatprep.subr.bf16.mxu0 0
      %1087 = vmatpush1.bf16.xpose.msra.mxu0 %v1084
      %1088 = vmatprep.subr.bf16.mxu0 0
      %1089 = vmatpush1.bf16.xpose.msra.mxu0 %v1081
      %1090 = vmatprep.subr.bf16.mxu0 0
      %1091 = vmatpush1.bf16.xpose.msra.mxu0 %v1078
      %1092 = vmatprep.subr.bf16.mxu0 0
      %1093 = vmatpush1.bf16.xpose.msra.mxu0 %v1075
      %1094 = vmatprep.subr.bf16.mxu0 0
      %1095 = vmatpush1.bf16.xpose.msra.mxu0 %v1072
      %1096 = vmatprep.subr.bf16.mxu0 0
      %1097 = vmatpush1.bf16.xpose.msra.mxu0 %v1069
      %1098 = vmatprep.subr.bf16.mxu0 0
      %1099 = vmatpush1.bf16.xpose.msra.mxu0 %v1066
      %1100 = vmatprep.subr.bf16.mxu0 0
      %1101 = vmatpush1.bf16.xpose.msra.mxu0 %v1063
      %1102 = vmatprep.subr.bf16.mxu0 0
      %1103 = vmatpush2.bf16.xpose.msra.mxu0 0
      %1104 = vmatprep.subr.bf16.mxu0 0
      %1105 = vmatpush2.bf16.xpose.msra.mxu0 0
      %1106 = vmatprep.subr.bf16.mxu0 0
      %1107 = vmatpush2.bf16.xpose.msra.mxu0 0
      %1108 = vmatprep.subr.bf16.mxu0 0
      %1109 = vmatpush2.bf16.xpose.msra.mxu0 0
      %1110 = vmatprep.subr.bf16.mxu0 0
      %1111 = vmatpush2.bf16.xpose.msra.mxu0 0
      %1112 = vmatprep.subr.bf16.mxu0 0
      %1113 = vmatpush2.bf16.xpose.msra.mxu0 0
      %1114 = vmatprep.subr.bf16.mxu0 0
      %1115 = vmatpush2.bf16.xpose.msra.mxu0 0
      %1116 = vmatprep.subr.bf16.mxu0 0
      %1117 = vmatpush2.bf16.xpose.msra.mxu0 0
      %1118 = vmatprep.mubr.bf16.mxu0 0
      %1119 = vmatmul.mubr.bf16.gmra.mxu0 %v1060
      %v1120 = vpop.f32.mrf.mxu0
      %v1121 = vadd.f32 0.0, %v1120
      %v1122 = vpop.f32.mrf.mxu0
      %v1123 = vpop.f32.mrf.mxu0
      %v1124 = vpop.f32.mrf.mxu0
      %1125 = vdwg.mxu0
      %v1126 = vadd.f32 %v977, %v1121
      %s1127 = scalar_lea.vmem %s1, 28
      %v1128 = vld [vmem:[%s1127] sm:$0xf]
      %v1131 = vunpack.c.l.b16 %v232
      %v1132 = vunpack.c.l.b16 %v233
      %v1133 = vpack.c.b16 %v294, %v293
      %v1134 = vpack.c.b16 %v296, %v295
      %v1135 = vpack.c.b16 %v298, %v297
      %v1136 = vpack.c.b16 %v300, %v299
      %v1137 = vpack.c.b16 %v302, %v301
      %v1138 = vpack.c.b16 %v304, %v303
      %v1139 = vpack.c.b16 %v306, %v305
      %v1140 = vpack.c.b16 %v1131, %v307
      %v1141 = vpack.c.b16 %v1132, %v1132
      %v1143 = vshrl.u32 %v1133, 16
      %v1145 = vshll.u32 %v1133, 16
      %v1147 = vrot.slane %v1145, 1
      %v1148 = vor.u32 %v1143, %v1147
      %v1150 = vshll.u32 %v1134, 16
      %v1152 = vrot.slane %v1150, 1
      %v1153 = vsel %vm496, %v1148, %v1152
      %v1154 = vshrl.u32 %v1134, 16
      %v1156 = vor.u32 %v1154, %v1152
      %v1158 = vshll.u32 %v1135, 16
      %v1160 = vrot.slane %v1158, 1
      %v1161 = vsel %vm496, %v1156, %v1160
      %v1162 = vshrl.u32 %v1135, 16
      %v1164 = vor.u32 %v1162, %v1160
      %v1166 = vshll.u32 %v1136, 16
      %v1168 = vrot.slane %v1166, 1
      %v1169 = vsel %vm496, %v1164, %v1168
      %v1170 = vshrl.u32 %v1136, 16
      %v1172 = vor.u32 %v1170, %v1168
      %v1174 = vshll.u32 %v1137, 16
      %v1176 = vrot.slane %v1174, 1
      %v1177 = vsel %vm496, %v1172, %v1176
      %v1178 = vshrl.u32 %v1137, 16
      %v1180 = vor.u32 %v1178, %v1176
      %v1182 = vshll.u32 %v1138, 16
      %v1184 = vrot.slane %v1182, 1
      %v1185 = vsel %vm496, %v1180, %v1184
      %v1186 = vshrl.u32 %v1138, 16
      %v1188 = vor.u32 %v1186, %v1184
      %v1190 = vshll.u32 %v1139, 16
      %v1192 = vrot.slane %v1190, 1
      %v1193 = vsel %vm496, %v1188, %v1192
      %v1194 = vshrl.u32 %v1139, 16
      %v1196 = vor.u32 %v1194, %v1192
      %v1198 = vshll.u32 %v1140, 16
      %v1200 = vrot.slane %v1198, 1
      %v1201 = vsel %vm496, %v1196, %v1200
      %v1202 = vshrl.u32 %v1140, 16
      %v1204 = vor.u32 %v1202, %v1200
      %v1206 = vshll.u32 %v1141, 16
      %v1208 = vrot.slane %v1206, 1
      %v1209 = vsel %vm496, %v1204, %v1208
      %v1211 = vsel %vm316, %v1128, 0
      %v1214 = vsel %vm316, %v1153, 0
      %v1217 = vsel %vm316, %v1161, 0
      %v1220 = vsel %vm316, %v1169, 0
      %v1223 = vsel %vm316, %v1177, 0
      %v1226 = vsel %vm316, %v1185, 0
      %v1229 = vsel %vm316, %v1193, 0
      %v1232 = vsel %vm316, %v1201, 0
      %v1235 = vsel %vm316, %v1209, 0
      %1237 = vmatprep.subr.bf16.mxu0 0
      %1238 = vmatpush1.bf16.xpose.msra.mxu0 %v1235
      %1239 = vmatprep.subr.bf16.mxu0 0
      %1240 = vmatpush1.bf16.xpose.msra.mxu0 %v1232
      %1241 = vmatprep.subr.bf16.mxu0 0
      %1242 = vmatpush1.bf16.xpose.msra.mxu0 %v1229
      %1243 = vmatprep.subr.bf16.mxu0 0
      %1244 = vmatpush1.bf16.xpose.msra.mxu0 %v1226
      %1245 = vmatprep.subr.bf16.mxu0 0
      %1246 = vmatpush1.bf16.xpose.msra.mxu0 %v1223
      %1247 = vmatprep.subr.bf16.mxu0 0
      %1248 = vmatpush1.bf16.xpose.msra.mxu0 %v1220
      %1249 = vmatprep.subr.bf16.mxu0 0
      %1250 = vmatpush1.bf16.xpose.msra.mxu0 %v1217
      %1251 = vmatprep.subr.bf16.mxu0 0
      %1252 = vmatpush1.bf16.xpose.msra.mxu0 %v1214
      %1253 = vmatprep.subr.bf16.mxu0 0
      %1254 = vmatpush2.bf16.xpose.msra.mxu0 0
      %1255 = vmatprep.subr.bf16.mxu0 0
      %1256 = vmatpush2.bf16.xpose.msra.mxu0 0
      %1257 = vmatprep.subr.bf16.mxu0 0
      %1258 = vmatpush2.bf16.xpose.msra.mxu0 0
      %1259 = vmatprep.subr.bf16.mxu0 0
      %1260 = vmatpush2.bf16.xpose.msra.mxu0 0
      %1261 = vmatprep.subr.bf16.mxu0 0
      %1262 = vmatpush2.bf16.xpose.msra.mxu0 0
      %1263 = vmatprep.subr.bf16.mxu0 0
      %1264 = vmatpush2.bf16.xpose.msra.mxu0 0
      %1265 = vmatprep.subr.bf16.mxu0 0
      %1266 = vmatpush2.bf16.xpose.msra.mxu0 0
      %1267 = vmatprep.subr.bf16.mxu0 0
      %1268 = vmatpush2.bf16.xpose.msra.mxu0 0
      %1269 = vmatprep.mubr.bf16.mxu0 0
      %1270 = vmatmul.mubr.bf16.gmra.mxu0 %v1211
      %v1271 = vpop.f32.mrf.mxu0
      %v1272 = vadd.f32 0.0, %v1271
      %v1273 = vpop.f32.mrf.mxu0
      %v1274 = vpop.f32.mrf.mxu0
      %v1275 = vpop.f32.mrf.mxu0
      %1276 = vdwg.mxu0
      %v1277 = vadd.f32 %v1126, %v1272
      %s1278 = scalar_lea.vmem %s1, 32
      %v1279 = vld [vmem:[%s1278] sm:$0xf]
      %vm1280 = vcmask 1046528
      %v1281 = vrot.slane %v982, 1
      %v1282 = vrot.slane %v983, 1
      %v1283 = vsel %vm1280, %v1281, %v1282
      %v1284 = vrot.slane %v984, 1
      %v1285 = vsel %vm1280, %v1282, %v1284
      %v1286 = vrot.slane %v985, 1
      %v1287 = vsel %vm1280, %v1284, %v1286
      %v1288 = vrot.slane %v986, 1
      %v1289 = vsel %vm1280, %v1286, %v1288
      %v1290 = vrot.slane %v987, 1
      %v1291 = vsel %vm1280, %v1288, %v1290
      %v1292 = vrot.slane %v988, 1
      %v1293 = vsel %vm1280, %v1290, %v1292
      %v1294 = vrot.slane %v989, 1
      %v1295 = vsel %vm1280, %v1292, %v1294
      %v1296 = vrot.slane %v990, 1
      %v1297 = vsel %vm1280, %v1294, %v1296
      %v1299 = vsel %vm316, %v1279, 0
      %v1302 = vsel %vm316, %v1283, 0
      %v1305 = vsel %vm316, %v1285, 0
      %v1308 = vsel %vm316, %v1287, 0
      %v1311 = vsel %vm316, %v1289, 0
      %v1314 = vsel %vm316, %v1291, 0
      %v1317 = vsel %vm316, %v1293, 0
      %v1320 = vsel %vm316, %v1295, 0
      %v1323 = vsel %vm316, %v1297, 0
      %1325 = vmatprep.subr.bf16.mxu0 0
      %1326 = vmatpush1.bf16.xpose.msra.mxu0 %v1323
      %1327 = vmatprep.subr.bf16.mxu0 0
      %1328 = vmatpush1.bf16.xpose.msra.mxu0 %v1320
      %1329 = vmatprep.subr.bf16.mxu0 0
      %1330 = vmatpush1.bf16.xpose.msra.mxu0 %v1317
      %1331 = vmatprep.subr.bf16.mxu0 0
      %1332 = vmatpush1.bf16.xpose.msra.mxu0 %v1314
      %1333 = vmatprep.subr.bf16.mxu0 0
      %1334 = vmatpush1.bf16.xpose.msra.mxu0 %v1311
      %1335 = vmatprep.subr.bf16.mxu0 0
      %1336 = vmatpush1.bf16.xpose.msra.mxu0 %v1308
      %1337 = vmatprep.subr.bf16.mxu0 0
      %1338 = vmatpush1.bf16.xpose.msra.mxu0 %v1305
      %1339 = vmatprep.subr.bf16.mxu0 0
      %1340 = vmatpush1.bf16.xpose.msra.mxu0 %v1302
      %1341 = vmatprep.subr.bf16.mxu0 0
      %1342 = vmatpush2.bf16.xpose.msra.mxu0 0
      %1343 = vmatprep.subr.bf16.mxu0 0
      %1344 = vmatpush2.bf16.xpose.msra.mxu0 0
      %1345 = vmatprep.subr.bf16.mxu0 0
      %1346 = vmatpush2.bf16.xpose.msra.mxu0 0
      %1347 = vmatprep.subr.bf16.mxu0 0
      %1348 = vmatpush2.bf16.xpose.msra.mxu0 0
      %1349 = vmatprep.subr.bf16.mxu0 0
      %1350 = vmatpush2.bf16.xpose.msra.mxu0 0
      %1351 = vmatprep.subr.bf16.mxu0 0
      %1352 = vmatpush2.bf16.xpose.msra.mxu0 0
      %1353 = vmatprep.subr.bf16.mxu0 0
      %1354 = vmatpush2.bf16.xpose.msra.mxu0 0
      %1355 = vmatprep.subr.bf16.mxu0 0
      %1356 = vmatpush2.bf16.xpose.msra.mxu0 0
      %1357 = vmatprep.mubr.bf16.mxu0 0
      %1358 = vmatmul.mubr.bf16.gmra.mxu0 %v1299
      %v1359 = vpop.f32.mrf.mxu0
      %v1360 = vadd.f32 0.0, %v1359
      %v1361 = vpop.f32.mrf.mxu0
      %v1362 = vpop.f32.mrf.mxu0
      %v1363 = vpop.f32.mrf.mxu0
      %1364 = vdwg.mxu0
      %v1365 = vadd.f32 %v1277, %v1360
      %v1366 = vld [vmem:[%s2] sm:$0xff]
      %1368 = vset.pattern.permute.xlu0 0
      %1369 = vperm.xlu0 %1368, %v1366
      %v1370 = vpop.permute.xlu0 %1369
      %v1372 = vadd.f32 %v1365, %v1370
      %vm1373 = vcmp.ge.f32.partialorder %v1372, 0.0
      %v1374 = vmul.f32 %v1372, 0.1
      %v1375 = vsel %vm1373, %v1372, %v1374
      %v1376 = vpack.c.bf16 %v1375, %v1375
      %1377 = vst [vmem:[%s188] sm:$0xf] %v1376
      %p1378 = scmp.lt.s32.totalorder %s18, 1
      %s1379 = scalar_select %p1378, %s18, 1
      %p1380 = scmp.lt.s32.totalorder %s19, 0
      %s1381 = scalar_select %p1380, %s19, 0
      %s1382 = sadd.s32 %s1381, %s1379
      %s1383 = smul.addr %s1382, 4
      %s1384 = scalar_lea.vmem %s3, %s1383
      // Predicated region
      $region33: #{downscale_forward.1} parent=31 // pred_check
        %p1385 = pneg %p114
      $region34: #{downscale_forward.1} parent=31 // pred_check_branch
        %1387 = sbr.rel (%p1385) target = $region36
      $region35: #{downscale_forward.1} parent=31 // pred_region
        _
      $region36: #{downscale_forward.1} parent=31 // pred_fallthru
        _
    $region32: #{downscale_forward.1} parent=5 // pred_fallthru
      _
    %p1388 = scmp.le.s32.totalorder 2, %s9
    // Predicated region
    $region37: #{downscale_forward.1} parent=5 // pred_check
      %p1389 = pneg %p1388
    $region38: #{downscale_forward.1} parent=5 // pred_check_branch
      %1391 = sbr.rel (%p1389) target = $region40
    $region39: #{downscale_forward.1} parent=5 // pred_region
      %s1392 = ssub.s32 %s9, 2
      // Predicated region
      $region41: #{downscale_forward.1} parent=39 // pred_check
        %p1393 = pneg %p120
      $region42: #{downscale_forward.1} parent=39 // pred_check_branch
        %1395 = sbr.rel (%p1393) target = $region44
      $region43: #{downscale_forward.1} parent=39 // pred_region
        %p1396 = scmp.lt.s32.totalorder %s20, 1
        %s1397 = scalar_select %p1396, %s20, 1
        %p1398 = scmp.lt.s32.totalorder %s21, 0
        %s1399 = scalar_select %p1398, %s21, 0
        %s1400 = sadd.s32 %s1399, %s1397
        %s1401 = smul.addr %s1400, 4
        %s1402 = scalar_lea.vmem %s3, %s1401
      $region44: #{downscale_forward.1} parent=39 // pred_fallthru
        _
    $region40: #{downscale_forward.1} parent=5 // pred_fallthru
      _
  $region6: #{downscale_forward.1} parent=0 // loop_footer
    %s13 = sadd.s32 1, %s9
  $region7: #{downscale_forward.1} parent=0 // loop_footer_branch
    %8 = sbr.rel target = $region3
  $region8: #{downscale_forward.1} parent=0 // loop_exit
    _

</llo_original>
